<compile_context>
chip_gen: v7x
topology: tpu7x:2x2x1
jax: 0.10.0
libtpu: 0.0.40
codegen_flags: <defaults>
</compile_context>

<pallas_src>
import jax
import jax.numpy as jnp
from jax.experimental import pallas as pl
from jax.experimental.pallas import tpu as pltpu


def _add_prompt_kernel(x_ref, p_ref, o_ref):
    # x_ref / o_ref: (b_tile, f_tile); p_ref: (1, f_tile) -> sublane-broadcast add.
    o_ref[...] = x_ref[...] + p_ref[...]


def _round_up(x, m):
    return ((x + m - 1) // m) * m


def _largest_div_mult(n, unit, cap):
    """Largest multiple of `unit` dividing n (n is a multiple of unit) and <= cap."""
    m = n // unit
    cap_m = max(1, cap // unit)
    best = 1
    i = 1
    while i * i <= m:
        if m % i == 0:
            lo, hi = i, m // i
            if lo <= cap_m and lo > best:
                best = lo
            if hi <= cap_m and hi > best:
                best = hi
        i += 1
    return best * unit


def _choose_tiles(B, F, itemsize, target_block_bytes=2 << 20):
    """Joint (b_tile, f_tile) choice targeting ~2 MiB x-blocks, VMEM-safe on all gens."""
    target_elems = max(1024, target_block_bytes // itemsize)
    F_pad = _round_up(F, 128)
    # f_tile: largest multiple-of-128 divisor of F_pad that still leaves room for
    # at least an 8-row batch block inside the byte budget.
    f_cap = max(128, ((target_elems // 8) // 128) * 128)
    f_tile = _largest_div_mult(F_pad, 128, min(f_cap, F_pad))
    # b_tile: fill the remaining budget with batch rows; chosen as a multiple-of-8
    # divisor of the 8-padded batch so padding waste is at most 7 rows.
    B8 = _round_up(B, 8)
    b_cap = max(8, ((target_elems // f_tile) // 8) * 8)
    b_tile = _largest_div_mult(B8, 8, min(b_cap, B8))
    if b_tile >= B:
        # Single batch block: a full-extent sublane dim is layout-legal -> no padding.
        b_tile, B_pad = B, B
    else:
        B_pad = B8
    return b_tile, f_tile, B_pad, F_pad


def build_prompt(pad_up, pad_down, pad_left, pad_right, H, W, dtype):
    """Assemble the (C, H, W) frame prompt once (batch-invariant, tiny)."""
    C = pad_up.shape[1]
    P = pad_up.shape[2]
    prompt = jnp.zeros((C, H, W), dtype)
    prompt = prompt.at[:, 0:P, :].set(pad_up[0].astype(dtype))
    prompt = prompt.at[:, H - P:H, :].set(pad_down[0].astype(dtype))
    prompt = prompt.at[:, P:H - P, 0:P].set(pad_left[0].astype(dtype))
    prompt = prompt.at[:, P:H - P, W - P:W].set(pad_right[0].astype(dtype))
    return prompt


def pad_prompter_forward(x, pad_up, pad_down, pad_left, pad_right):
    """x: (B, C, H, W). Returns x + frame-prompt, shape (B, C, H, W), dtype of x."""
    B, C, H, W = x.shape
    dtype = x.dtype
    itemsize = jnp.dtype(dtype).itemsize
    F = C * H * W

    # Batch-invariant prompt built once outside the kernel (pure layout plumbing).
    prompt = build_prompt(pad_up, pad_down, pad_left, pad_right, H, W, dtype)
    x_flat = x.reshape(B, F)            # lane-dense slab: last dim maps to lanes
    prompt_flat = prompt.reshape(1, F)

    b_tile, f_tile, B_pad, F_pad = _choose_tiles(B, F, itemsize)

    # Zero-pad so blocks always tile exactly (trimmed after the kernel).
    if F_pad != F:
        x_flat = jnp.pad(x_flat, ((0, 0), (0, F_pad - F)))
        prompt_flat = jnp.pad(prompt_flat, ((0, 0), (0, F_pad - F)))
    if B_pad != B:
        x_flat = jnp.pad(x_flat, ((0, B_pad - B), (0, 0)))

    # Feature axis outer, batch axis inner: the prompt's block index (0, fi) is
    # constant across the inner batch loop, so its DMA is not re-issued per step.
    grid = (F_pad // f_tile, B_pad // b_tile)

    block_bytes = b_tile * f_tile * itemsize
    prompt_bytes = f_tile * itemsize
    working_set = 2 * (2 * block_bytes + prompt_bytes)   # double-buffered x + out + prompt
    vmem_limit = int(min(48 << 20, max(2 * working_set + (2 << 20), 16 << 20)))

    cost = pl.CostEstimate(
        flops=B_pad * F_pad,
        transcendentals=0,
        # x read + out write per element; prompt read once per feature block.
        bytes_accessed=(2 * B_pad * F_pad + F_pad) * itemsize,
    )

    out_flat = pl.pallas_call(
        _add_prompt_kernel,
        out_shape=jax.ShapeDtypeStruct((B_pad, F_pad), dtype),
        grid_spec=pltpu.PrefetchScalarGridSpec(
            num_scalar_prefetch=0,
            grid=grid,
            in_specs=[
                pl.BlockSpec((b_tile, f_tile), lambda fi, bi: (bi, fi)),  # x slab
                pl.BlockSpec((1, f_tile), lambda fi, bi: (0, fi)),        # prompt
            ],
            out_specs=pl.BlockSpec((b_tile, f_tile), lambda fi, bi: (bi, fi)),
        ),
        compiler_params=pltpu.CompilerParams(
            dimension_semantics=("parallel", "parallel"),
            vmem_limit_bytes=vmem_limit,
        ),
        cost_estimate=cost,
        input_output_aliases={0: 0},   # out aliases x slab (x not needed for backward)
    )(x_flat, prompt_flat)

    out = out_flat
    if B_pad != B:
        out = out[:B]
    if F_pad != F:
        out = out[:, :F]
    return out.reshape(B, C, H, W)


def pad_prompter_reference(x, pad_up, pad_down, pad_left, pad_right):
    """Pure-JAX reference mirroring the PyTorch forward."""
    B, C, H, W = x.shape
    P = pad_up.shape[2]
    prompt = jnp.zeros((B, C, H, W), x.dtype)
    prompt = prompt.at[:, :, 0:P, :].set(pad_up)
    prompt = prompt.at[:, :, H - P:H, :].set(pad_down)
    prompt = prompt.at[:, :, P:H - P, 0:P].set(pad_left)
    prompt = prompt.at[:, :, P:H - P, W - P:].set(pad_right)
    return x + prompt


def _run_case(key, B, C, H, W, P):
    h = H - 2 * P
    kx, ku, kd, kl, kr = jax.random.split(key, 5)
    x = jax.random.normal(kx, (B, C, H, W), dtype=jnp.float32)
    pad_up = jax.random.normal(ku, (1, C, P, W), dtype=jnp.float32)
    pad_down = jax.random.normal(kd, (1, C, P, W), dtype=jnp.float32)
    pad_left = jax.random.normal(kl, (1, C, h, P), dtype=jnp.float32)
    pad_right = jax.random.normal(kr, (1, C, h, P), dtype=jnp.float32)

    out = pad_prompter_forward(x, pad_up, pad_down, pad_left, pad_right)
    out = jax.block_until_ready(out)

    ref = pad_prompter_reference(x, pad_up, pad_down, pad_left, pad_right)
    assert out.shape == (B, C, H, W) and out.dtype == x.dtype
    assert jnp.allclose(out, ref, atol=1e-6), "mismatch vs reference"


if __name__ == "__main__":
    key = jax.random.PRNGKey(0)
    k0, k1 = jax.random.split(key, 2)

    # Small config consistent with the module: image_size=16, prompt_size=4, 3 channels.
    _run_case(k0, B=2, C=3, H=16, W=16, P=4)
    # Exercise the robustness paths: C*H*W not a multiple of 128, B not a multiple of 8.
    _run_case(k1, B=5, C=3, H=15, W=15, P=3)

    print("KERNEL_OK")
</pallas_src>

<mosaic_0001>
module attributes {stable_mosaic.version = 11 : i64} {
  func.func @_add_prompt_kernel(%arg0: i32, %arg1: i32, %arg2: memref<2x768xf32, #tpu.memory_space<vmem>>, %arg3: memref<1x768xf32, #tpu.memory_space<vmem>>, %arg4: memref<2x768xf32, #tpu.memory_space<vmem>>) attributes {dimension_semantics = [#tpu.dimension_semantics<parallel>, #tpu.dimension_semantics<parallel>], iteration_bounds = array<i64: 1, 1>, scalar_prefetch = 0 : i64, scratch_operands = 0 : i64, tpu.core_type = #tpu.core_type<tc>, window_params = [{transform_indices = @transform_0, window_bounds = array<i64: 2, 768>}, {transform_indices = @transform_1, window_bounds = array<i64: 1, 768>}, {transform_indices = @transform_2, window_bounds = array<i64: 2, 768>}]} {
    %c0 = arith.constant 0 : index
    %c0_0 = arith.constant 0 : index
    %0 = vector.load %arg2[%c0, %c0_0] : memref<2x768xf32, #tpu.memory_space<vmem>>, vector<2x768xf32>
    %c0_1 = arith.constant 0 : index
    %c0_2 = arith.constant 0 : index
    %1 = vector.load %arg3[%c0_1, %c0_2] : memref<1x768xf32, #tpu.memory_space<vmem>>, vector<1x768xf32>
    %2 = vector.broadcast %1 : vector<1x768xf32> to vector<2x768xf32>
    %3 = arith.addf %0, %2 : vector<2x768xf32>
    %c0_3 = arith.constant 0 : index
    %c0_4 = arith.constant 0 : index
    %4 = vector.load %arg4[%c0_3, %c0_4] : memref<2x768xf32, #tpu.memory_space<vmem>>, vector<2x768xf32>
    tpu.vector_store %arg4[%c0_3, %c0_4], %3 {strides = array<i32>} : memref<2x768xf32, #tpu.memory_space<vmem>>, vector<2x768xf32>,
    return
  }
  func.func @transform_0(%arg0: i32, %arg1: i32) -> (i32, i32) {
    %c0_i32 = arith.constant 0 : i32
    return %arg1, %arg0 : i32, i32
  }
  func.func @transform_1(%arg0: i32, %arg1: i32) -> (i32, i32) {
    %c0_i32 = arith.constant 0 : i32
    %c0_i32_0 = arith.constant 0 : i32
    return %c0_i32, %arg0 : i32, i32
  }
  func.func @transform_2(%arg0: i32, %arg1: i32) -> (i32, i32) {
    %c0_i32 = arith.constant 0 : i32
    return %arg1, %arg0 : i32, i32
  }
}

</mosaic_0001>

<llo_original>
// kernel: tpu_custom_call.1
$region0: #{tpu_custom_call.1}
  #allocation0 [shape = 'u32[]', space=smem, size = 0x4, offset = 0x4, fixed_abs, tag = 'smem constant byte address 0x4 - core index']
  #allocation1 [shape = 'u32[144,128]{1,0:T(1,128)}', space=vmem, size = 0x12000, scoped, tag = 'internal scratch']
  %s0 = inlined_call_operand.hbm [shape: f32[2,768], index: 0, kind: input, shape index: {}, may-alias: {0,2}]
  %s1 = inlined_call_operand.vmem [shape: f32[1,768], index: 1, kind: input, shape index: {}]
  %s2 = inlined_call_operand.hbm [shape: f32[2,768], index: 2, kind: output, shape index: {}, may-alias: {0,2}]
  %s3 = sld [smem:[#allocation0]]
  $region22: #{tpu_custom_call.1} parent=0
    _
  %s5 = ssub.s32 1, %s3
  %s6 = scalar_select 0, %s5, %s3
  $region1: #{tpu_custom_call.1} parent=0
    #allocation2 [shape = 'u8[6144]{0}', space=vmem, size = 0x1800, scoped, tag = 'input window, operand 0, single buffered']
    #allocation3 [shape = 's32[1]{0}', space=sflag, size = 0x4, scoped, tag = 'scoped memory for tpu_custom_call.1']
    #allocation4 [shape = 's32[1]{0}', space=sflag, size = 0x4, scoped, tag = 'scoped memory for tpu_custom_call.1']
    #allocation5 [shape = 'u8[6144]{0}', space=vmem, size = 0x1800, scoped, tag = 'output window, operand 0, single buffered']
    %7 = vsyncpa [#allocation3], 0
    %8 = vsyncpa [#allocation4], 0
    // Predicated region
    $region2: #{tpu_custom_call.1} parent=1 // pred_check
      _
    $region3: #{tpu_custom_call.1} parent=1 // pred_check_branch
      %10 = sbr.rel (0) target = $region5
    $region4: #{tpu_custom_call.1} parent=1 // pred_region
      %s12 = ssub.s32 192, 192
      %13 = vsyncadd [#allocation3], %s12
      %s15 = sshll.u32 [#allocation2], 4
      %s16 = int_to_ptr.vmem [resolvable:$true] %s15
      %18 = dma.hbm_to_vmem [thread:$0]  %s0, 192, %s16, [#allocation3]
    $region5: #{tpu_custom_call.1} parent=1 // pred_fallthru
      _
    // Predicated region
    $region6: #{tpu_custom_call.1} parent=1 // pred_check
      _
    $region7: #{tpu_custom_call.1} parent=1 // pred_check_branch
      %20 = sbr.rel (0) target = $region9
    $region8: #{tpu_custom_call.1} parent=1 // pred_region
      _
    $region9: #{tpu_custom_call.1} parent=1 // pred_fallthru
      _
    // Predicated region
    $region10: #{tpu_custom_call.1} parent=1 // pred_check
      _
    $region11: #{tpu_custom_call.1} parent=1 // pred_check_branch
      %22 = sbr.rel (0) target = $region13
    $region12: #{tpu_custom_call.1} parent=1 // pred_region
      %23 = dma.done [#allocation3], 192
    $region13: #{tpu_custom_call.1} parent=1 // pred_fallthru
      _
    %v24 = vld [vmem:[#allocation2] sm:$0xff]
    %v25 = vld [vmem:[#allocation2 + $0x8] sm:$0xf]
    %v26 = vld [vmem:[%s1] sm:$0x3f]
    %v28 = vlaneseq
    %v29 = vshrl.u32 %v28, 7
    %v30 = vsub.s32 0, %v29
    %v31 = vrot.slane %v26, %v30
    %v32 = vlaneseq
    %v33 = vshrl.u32 %v32, 7
    %v34 = vsub.s32 1, %v33
    %v35 = vrot.slane %v26, %v34
    %v36 = vlaneseq
    %v37 = vshrl.u32 %v36, 7
    %v38 = vsub.s32 2, %v37
    %v39 = vrot.slane %v26, %v38
    %v40 = vlaneseq
    %v41 = vshrl.u32 %v40, 7
    %v42 = vsub.s32 3, %v41
    %v43 = vrot.slane %v26, %v42
    %v44 = vlaneseq
    %v45 = vshrl.u32 %v44, 7
    %v46 = vsub.s32 4, %v45
    %v47 = vrot.slane %v26, %v46
    %v48 = vlaneseq
    %v49 = vshrl.u32 %v48, 7
    %v50 = vsub.s32 5, %v49
    %v51 = vrot.slane %v26, %v50
    %v52 = vcombine.low %v31, %v35
    %v53 = vcombine.low %v39, %v43
    %v55 = vunpack.c.l.s4 1983009808
    %v56 = vunpack.c.0.s8 %v55
    %v57 = vlaneseq
    %v58 = vshrl.u32 %v57, 7
    %v59 = vsub.s32 %v56, %v58
    %v60 = vrot.slane %v52, %v59
    %v62 = vunpack.c.l.s4 1983009808
    %v63 = vunpack.c.0.s8 %v62
    %v64 = vlaneseq
    %v65 = vshrl.u32 %v64, 7
    %v66 = vsub.s32 %v63, %v65
    %v67 = vrot.slane %v53, %v66
    %v68 = vcombine.low %v60, %v67
    %v69 = vcombine.low %v47, %v51
    %v71 = vunpack.c.l.s4 1983009808
    %v72 = vunpack.c.0.s8 %v71
    %v73 = vlaneseq
    %v74 = vshrl.u32 %v73, 7
    %v75 = vsub.s32 %v72, %v74
    %v76 = vrot.slane %v69, %v75
    %v79 = vadd.f32 %v24, %v68
    %v80 = vadd.f32 %v25, %v76
    %81 = vst [vmem:[#allocation5] sm:$0xff] %v79
    %82 = vst [vmem:[#allocation5 + $0x8] sm:$0xf] %v80
    // Predicated region
    $region14: #{tpu_custom_call.1} parent=1 // pred_check
      _
    $region15: #{tpu_custom_call.1} parent=1 // pred_check_branch
      %84 = sbr.rel (0) target = $region17
    $region16: #{tpu_custom_call.1} parent=1 // pred_region
      %s86 = ssub.s32 192, 192
      %87 = vsyncadd [#allocation4], %s86
      %s89 = sshll.u32 [#allocation5], 4
      %s90 = int_to_ptr.vmem [resolvable:$true] %s89
      %92 = dma.vmem_to_hbm [thread:$0]  %s90, 192, %s2, [#allocation4]
    $region17: #{tpu_custom_call.1} parent=1 // pred_fallthru
      _
    // Predicated region
    $region18: #{tpu_custom_call.1} parent=1 // pred_check
      _
    $region19: #{tpu_custom_call.1} parent=1 // pred_check_branch
      %94 = sbr.rel (0) target = $region21
    $region20: #{tpu_custom_call.1} parent=1 // pred_region
      %95 = dma.done [#allocation4], 192
    $region21: #{tpu_custom_call.1} parent=1 // pred_fallthru
      _
    %96 = vsyncpa [#allocation3], 1
    %97 = vsyncpa [#allocation4], 1

</llo_original>
